<compile_context>
chip_gen: v6e
topology: v6e:2x2x1
jax: 0.10.0
libtpu: 0.0.40
codegen_flags: <defaults>
</compile_context>

<pallas_src>
import functools

import jax
import jax.numpy as jnp
from jax.experimental import pallas as pl
from jax.experimental.pallas import tpu as pltpu

_LANE = 128
_TM_MAX = 8192  # rows per block -> (8192, 128) f32 = 4 MiB per input block


def _cdiv(a, b):
    return (a + b - 1) // b


def _sse_kernel(p_ref, t_ref, o_ref, *, tm, rem, inner, n_par, overlap):
    """Accumulates sum((p - t)^2) into a vreg-shaped (8, 128) output block."""
    pi = pl.program_id(0)   # core-split axis ("parallel")
    i = pl.program_id(1)    # reduction axis ("arbitrary")

    @pl.when(i == 0)
    def _init():
        o_ref[...] = jnp.zeros_like(o_ref)

    def _accum(nrows):
        # nrows is a static Python int, multiple of 8 -> tile-aligned slice.
        # Cast in-kernel so sub-32-bit inputs travel HBM->VMEM at native width.
        d = (p_ref[:nrows, :].astype(jnp.float32)
             - t_ref[:nrows, :].astype(jnp.float32))
        d2 = d * d
        # VPU-only partial reduction: collapse the row tile onto one (8, 128)
        # vreg accumulator (no per-step cross-lane XLU reduce).
        o_ref[...] += jnp.sum(d2.reshape(nrows // 8, 8, _LANE), axis=0)

    # With an odd tile count split over 2 cores, the last core revisits
    # `overlap` tiles the first core already handled; skip their accumulate
    # (the redundant DMA is harmless, the sum must not double-count).
    not_skipped = None
    if overlap:
        not_skipped = jnp.logical_or(pi != n_par - 1, i >= overlap)

    if rem:
        # Globally-last tile extends past the real rows: only its first `rem`
        # rows are valid.  Keep that off the hot path with pl.when.
        is_last = jnp.logical_and(pi == n_par - 1, i == inner - 1)
        hot = jnp.logical_not(is_last)
        if not_skipped is not None:
            hot = jnp.logical_and(hot, not_skipped)

        @pl.when(hot)
        def _hot():            # hot path: full, unmasked tile
            _accum(tm)

        @pl.when(is_last)
        def _last():           # cold path: valid prefix of the ragged tile
            _accum(rem)
    else:
        if not_skipped is not None:
            @pl.when(not_skipped)
            def _go():
                _accum(tm)
        else:
            _accum(tm)


def psnr_loss(predicted_image, target_image, max_val=1.0):
    """Matches PSNRLoss.forward: 20 * log10(max_val / sqrt(mean((p - t)^2)))."""
    assert predicted_image.shape == target_image.shape
    n = int(predicted_image.size)
    p = predicted_image.reshape(-1)
    t = target_image.reshape(-1)

    # Sublane multiple required by the narrower of the two input dtypes
    # (f32 -> 8 rows, bf16/f16 -> 16, int8/fp8 -> 32).
    itemsize = min(p.dtype.itemsize, t.dtype.itemsize)
    sub = max(8, 32 // itemsize)
    chunk = _LANE * sub

    # Largest 128*sub-aligned prefix -> lane-dense (m, 128) slab, no padding.
    # For aligned sizes (the common case) the slice is a no-op and the reshape
    # of the contiguous buffer is free.
    aligned_n = (n // chunk) * chunk

    sse = jnp.zeros((), jnp.float32)
    if aligned_n:
        m = aligned_n // _LANE
        p2 = p[:aligned_n].reshape(m, _LANE)
        t2 = t[:aligned_n].reshape(m, _LANE)

        tm = min(_TM_MAX, m)                 # multiple of `sub` (or == m)
        num_tiles = _cdiv(m, tm)
        # 2-way split of the row tiles over the leading "parallel" axis so a
        # megacore / multi-TC chip can run the halves on separate TensorCores.
        # Odd tile counts use an overlapping split; the duplicated tile is
        # skipped in-kernel on the second core.
        n_par = 2 if num_tiles >= 2 else 1
        inner = _cdiv(num_tiles, n_par)
        stride = num_tiles - inner           # 0 when n_par == 1
        overlap = n_par * inner - num_tiles  # 0 or 1 duplicated tiles

        kernel = functools.partial(
            _sse_kernel, tm=tm, rem=m % tm, inner=inner, n_par=n_par,
            overlap=overlap)

        partial_sse = pl.pallas_call(
            kernel,
            out_shape=jax.ShapeDtypeStruct((8 * n_par, _LANE), jnp.float32),
            grid_spec=pltpu.PrefetchScalarGridSpec(
                num_scalar_prefetch=0,
                grid=(n_par, inner),
                in_specs=[
                    pl.BlockSpec((tm, _LANE), lambda pi, i: (pi * stride + i, 0)),
                    pl.BlockSpec((tm, _LANE), lambda pi, i: (pi * stride + i, 0)),
                ],
                # Output block doubles as the per-core accumulator (resident
                # across the "arbitrary" reduction axis).
                out_specs=pl.BlockSpec((8, _LANE), lambda pi, i: (pi, 0)),
            ),
            compiler_params=pltpu.CompilerParams(
                dimension_semantics=("parallel", "arbitrary"),
                vmem_limit_bytes=48 * 1024 * 1024,
            ),
        )(p2, t2)
        sse = jnp.sum(partial_sse)

    if aligned_n < n:
        # Tiny (< 128*sub elements) unaligned tail, done in plain JAX.
        # TODO(synk): a fully copy-free ragged path would keep the inputs flat
        # in HBM (memory_space=pl.ANY) and DMA fixed-size chunks manually.
        dt = (p[aligned_n:].astype(jnp.float32)
              - t[aligned_n:].astype(jnp.float32))
        sse = sse + jnp.sum(dt * dt)

    mse = sse / jnp.float32(n)
    return 20.0 * jnp.log10(jnp.float32(max_val) / jnp.sqrt(mse))


def _reference_psnr(pred, target, max_val=1.0):
    mse = jnp.mean((pred.astype(jnp.float32) - target.astype(jnp.float32)) ** 2)
    return 20.0 * jnp.log10(jnp.float32(max_val) / jnp.sqrt(mse))


if __name__ == "__main__":
    key = jax.random.PRNGKey(0)
    k1, k2, k3, k4, k5, k6 = jax.random.split(key, 6)

    # Primary test: small NCHW image pair (fully aligned, single tile).
    pred = jax.random.uniform(k1, (2, 4, 16, 16), dtype=jnp.float32)
    target = jax.random.uniform(k2, (2, 4, 16, 16), dtype=jnp.float32)
    psnr = psnr_loss(pred, target, max_val=1.0)
    jax.block_until_ready(psnr)
    psnr_ref = _reference_psnr(pred, target, max_val=1.0)
    assert jnp.allclose(psnr, psnr_ref, rtol=1e-5, atol=1e-5), (psnr, psnr_ref)

    # Ragged element count: exercises the aligned-prefix kernel + JAX tail.
    pred2 = jax.random.uniform(k3, (2, 8, 159, 161), dtype=jnp.float32)
    target2 = jax.random.uniform(k4, (2, 8, 159, 161), dtype=jnp.float32)
    psnr2 = psnr_loss(pred2, target2, max_val=1.0)
    jax.block_until_ready(psnr2)
    psnr2_ref = _reference_psnr(pred2, target2, max_val=1.0)
    assert jnp.allclose(psnr2, psnr2_ref, rtol=1e-5, atol=1e-4), (psnr2, psnr2_ref)

    # Multi-tile: exercises the 2-way core split with an odd tile count
    # (overlap skip) and the ragged last tile (pl.when cold path).
    pred3 = jax.random.uniform(k5, (2, 8, 425, 320), dtype=jnp.float32)
    target3 = jax.random.uniform(k6, (2, 8, 425, 320), dtype=jnp.float32)
    psnr3 = psnr_loss(pred3, target3, max_val=1.0)
    jax.block_until_ready(psnr3)
    psnr3_ref = _reference_psnr(pred3, target3, max_val=1.0)
    assert jnp.allclose(psnr3, psnr3_ref, rtol=1e-4, atol=1e-3), (psnr3, psnr3_ref)

    print("KERNEL_OK")
</pallas_src>

<mosaic_0001>
module attributes {stable_mosaic.version = 11 : i64} {
  func.func @_sse_kernel(%arg0: i32, %arg1: i32, %arg2: memref<16x128xf32, #tpu.memory_space<vmem>>, %arg3: memref<16x128xf32, #tpu.memory_space<vmem>>, %arg4: memref<8x128xf32, #tpu.memory_space<vmem>>) attributes {dimension_semantics = [#tpu.dimension_semantics<parallel>, #tpu.dimension_semantics<arbitrary>], iteration_bounds = array<i64: 1, 1>, scalar_prefetch = 0 : i64, scratch_operands = 0 : i64, tpu.core_type = #tpu.core_type<tc>, window_params = [{transform_indices = @transform_0, window_bounds = array<i64: 16, 128>}, {transform_indices = @transform_1, window_bounds = array<i64: 16, 128>}, {transform_indices = @transform_2, window_bounds = array<i64: 8, 128>}]} {
    %c0_i32 = arith.constant 0 : i32
    %0 = arith.cmpi eq, %arg1, %c0_i32 : i32
    %1 = arith.extui %0 : i1 to i32
    %c0_i32_0 = arith.constant 0 : i32
    %2 = arith.cmpi ne, %1, %c0_i32_0 : i32
    scf.if %2 {
      %cst_8 = arith.constant 0.000000e+00 : f32
      %12 = vector.broadcast %cst_8 : f32 to vector<8x128xf32>
      %c0_9 = arith.constant 0 : index
      %c0_10 = arith.constant 0 : index
      %13 = vector.load %arg4[%c0_9, %c0_10] : memref<8x128xf32, #tpu.memory_space<vmem>>, vector<8x128xf32>
      tpu.vector_store %arg4[%c0_9, %c0_10], %12 {strides = array<i32>} : memref<8x128xf32, #tpu.memory_space<vmem>>, vector<8x128xf32>,
    } else {
    }
    %c0 = arith.constant 0 : index
    %c0_1 = arith.constant 0 : index
    %3 = vector.load %arg2[%c0, %c0_1] : memref<16x128xf32, #tpu.memory_space<vmem>>, vector<16x128xf32>
    %c0_2 = arith.constant 0 : index
    %c0_3 = arith.constant 0 : index
    %4 = vector.load %arg3[%c0_2, %c0_3] : memref<16x128xf32, #tpu.memory_space<vmem>>, vector<16x128xf32>
    %5 = arith.subf %3, %4 : vector<16x128xf32>
    %6 = arith.mulf %5, %5 : vector<16x128xf32>
    %c0_4 = arith.constant 0 : index
    %c0_5 = arith.constant 0 : index
    %7 = vector.load %arg4[%c0_4, %c0_5] : memref<8x128xf32, #tpu.memory_space<vmem>>, vector<8x128xf32>
    %8 = vector.shape_cast %6 : vector<16x128xf32> to vector<2x8x128xf32>
    %cst = arith.constant dense<0.000000e+00> : vector<8x128xf32>
    %9 = vector.multi_reduction <add>, %8, %cst [0] : vector<2x8x128xf32> to vector<8x128xf32>
    %10 = arith.addf %7, %9 : vector<8x128xf32>
    %c0_6 = arith.constant 0 : index
    %c0_7 = arith.constant 0 : index
    %11 = vector.load %arg4[%c0_6, %c0_7] : memref<8x128xf32, #tpu.memory_space<vmem>>, vector<8x128xf32>
    tpu.vector_store %arg4[%c0_6, %c0_7], %10 {strides = array<i32>} : memref<8x128xf32, #tpu.memory_space<vmem>>, vector<8x128xf32>,
    return
  }
  func.func @transform_0(%arg0: i32, %arg1: i32) -> (i32, i32) {
    %c0_i32 = arith.constant 0 : i32
    %0 = arith.muli %arg0, %c0_i32 : i32
    %1 = arith.addi %0, %arg1 : i32
    %c0_i32_0 = arith.constant 0 : i32
    %c0_i32_1 = arith.constant 0 : i32
    return %1, %c0_i32_0 : i32, i32
  }
  func.func @transform_1(%arg0: i32, %arg1: i32) -> (i32, i32) {
    %c0_i32 = arith.constant 0 : i32
    %0 = arith.muli %arg0, %c0_i32 : i32
    %1 = arith.addi %0, %arg1 : i32
    %c0_i32_0 = arith.constant 0 : i32
    %c0_i32_1 = arith.constant 0 : i32
    return %1, %c0_i32_0 : i32, i32
  }
  func.func @transform_2(%arg0: i32, %arg1: i32) -> (i32, i32) {
    %c0_i32 = arith.constant 0 : i32
    %c0_i32_0 = arith.constant 0 : i32
    return %arg0, %c0_i32 : i32, i32
  }
}

</mosaic_0001>

<llo_original>
// kernel: tpu_custom_call.1
$region0: #{tpu_custom_call.1}
  #allocation0 [shape = 'u32[]', space=smem, size = 0x4, offset = 0x4, fixed_abs, tag = 'smem constant byte address 0x4 - core index']
  #allocation1 [shape = 'u32[144,128]{1,0:T(1,128)}', space=vmem, size = 0x12000, scoped, tag = 'internal scratch']
  %s0 = inlined_call_operand.hbm [shape: f32[16,128], index: 0, kind: input, shape index: {}]
  %s1 = inlined_call_operand.hbm [shape: f32[16,128], index: 1, kind: input, shape index: {}]
  %s2 = inlined_call_operand.hbm [shape: f32[8,128], index: 2, kind: output, shape index: {}]
  %s3 = sld [smem:[#allocation0]]
  $region30: #{tpu_custom_call.1} parent=0
    _
  %s5 = ssub.s32 1, %s3
  %s6 = scalar_select 0, %s5, %s3
  $region1: #{tpu_custom_call.1} parent=0
    #allocation2 [shape = 'u8[8192]{0}', space=vmem, size = 0x2000, scoped, tag = 'input window, operand 0, single buffered']
    #allocation3 [shape = 's32[1]{0}', space=sflag, size = 0x4, scoped, tag = 'scoped memory for tpu_custom_call.1']
    #allocation4 [shape = 's32[1]{0}', space=sflag, size = 0x4, scoped, tag = 'scoped memory for tpu_custom_call.1']
    #allocation5 [shape = 'u8[8192]{0}', space=vmem, size = 0x2000, scoped, tag = 'input window, operand 1, single buffered']
    #allocation6 [shape = 's32[1]{0}', space=sflag, size = 0x4, scoped, tag = 'scoped memory for tpu_custom_call.1']
    #allocation7 [shape = 'u8[4096]{0}', space=vmem, size = 0x1000, scoped, tag = 'output window, operand 0, single buffered']
    %7 = vsyncpa [#allocation3], 0
    %8 = vsyncpa [#allocation6], 0
    %9 = vsyncpa [#allocation4], 0
    // Predicated region
    $region2: #{tpu_custom_call.1} parent=1 // pred_check
      _
    $region3: #{tpu_custom_call.1} parent=1 // pred_check_branch
      %11 = sbr.rel (0) target = $region5
    $region4: #{tpu_custom_call.1} parent=1 // pred_region
      %s13 = ssub.s32 256, 256
      %14 = vsyncadd [#allocation3], %s13
      %s15 = sshll.u32 [#allocation2], 4
      %s16 = int_to_ptr.vmem [resolvable:$true] %s15
      %21 = dma.hbm_to_vmem [thread:$0]  %s0, 256, %s16, [#allocation3], 128, 128, 8
    $region5: #{tpu_custom_call.1} parent=1 // pred_fallthru
      _
    // Predicated region
    $region6: #{tpu_custom_call.1} parent=1 // pred_check
      _
    $region7: #{tpu_custom_call.1} parent=1 // pred_check_branch
      %23 = sbr.rel (0) target = $region9
    $region8: #{tpu_custom_call.1} parent=1 // pred_region
      %s25 = ssub.s32 256, 256
      %26 = vsyncadd [#allocation6], %s25
      %s27 = sshll.u32 [#allocation5], 4
      %s28 = int_to_ptr.vmem [resolvable:$true] %s27
      %33 = dma.hbm_to_vmem [thread:$0]  %s1, 256, %s28, [#allocation6], 128, 128, 8
    $region9: #{tpu_custom_call.1} parent=1 // pred_fallthru
      _
    // Predicated region
    $region10: #{tpu_custom_call.1} parent=1 // pred_check
      _
    $region11: #{tpu_custom_call.1} parent=1 // pred_check_branch
      %35 = sbr.rel (0) target = $region13
    $region12: #{tpu_custom_call.1} parent=1 // pred_region
      %36 = dma.done [#allocation3], 256
    $region13: #{tpu_custom_call.1} parent=1 // pred_fallthru
      _
    // Predicated region
    $region14: #{tpu_custom_call.1} parent=1 // pred_check
      _
    $region15: #{tpu_custom_call.1} parent=1 // pred_check_branch
      %38 = sbr.rel (0) target = $region17
    $region16: #{tpu_custom_call.1} parent=1 // pred_region
      %39 = dma.done [#allocation6], 256
    $region17: #{tpu_custom_call.1} parent=1 // pred_fallthru
      _
    %p40 = scmp.eq.s32.totalorder 0, 0
    // Predicated region
    $region18: #{tpu_custom_call.1} parent=1 // pred_check
      %p41 = pneg %p40
    $region19: #{tpu_custom_call.1} parent=1 // pred_check_branch
      %43 = sbr.rel (%p41) target = $region21
    $region20: #{tpu_custom_call.1} parent=1 // pred_region
      %44 = vst [vmem:[#allocation7] sm:$0xff] 0.0
    $region21: #{tpu_custom_call.1} parent=1 // pred_fallthru
      _
    %v45 = vld [vmem:[#allocation2] sm:$0xff]
    %v46 = vld [vmem:[#allocation2 + $0x8] sm:$0xff]
    %v47 = vld [vmem:[#allocation5] sm:$0xff]
    %v48 = vld [vmem:[#allocation5 + $0x8] sm:$0xff]
    %v49 = vsub.f32 %v45, %v47
    %v50 = vsub.f32 %v46, %v48
    %v51 = vmul.f32 %v49, %v49
    %v52 = vmul.f32 %v50, %v50
    %v53 = vld [vmem:[#allocation7] sm:$0xff]
    %v54 = vadd.f32 %v51, %v52
    %v55 = vadd.f32 %v53, %v54
    %56 = vst [vmem:[#allocation7] sm:$0xff] %v55
    // Predicated region
    $region22: #{tpu_custom_call.1} parent=1 // pred_check
      _
    $region23: #{tpu_custom_call.1} parent=1 // pred_check_branch
      %58 = sbr.rel (0) target = $region25
    $region24: #{tpu_custom_call.1} parent=1 // pred_region
      %s60 = ssub.s32 128, 128
      %61 = vsyncadd [#allocation4], %s60
      %s63 = sshll.u32 [#allocation7], 4
      %s64 = int_to_ptr.vmem [resolvable:$true] %s63
      %66 = dma.vmem_to_hbm [thread:$0]  %s64, 128, %s2, [#allocation4]
    $region25: #{tpu_custom_call.1} parent=1 // pred_fallthru
      _
    // Predicated region
    $region26: #{tpu_custom_call.1} parent=1 // pred_check
      _
    $region27: #{tpu_custom_call.1} parent=1 // pred_check_branch
      %68 = sbr.rel (0) target = $region29
    $region28: #{tpu_custom_call.1} parent=1 // pred_region
      %69 = dma.done [#allocation4], 128
    $region29: #{tpu_custom_call.1} parent=1 // pred_fallthru
      _
    %70 = vsyncpa [#allocation3], 1
    %71 = vsyncpa [#allocation6], 1
    %72 = vsyncpa [#allocation4], 1

</llo_original>
